<compile_context>
chip_gen: v7x
topology: tpu7x:2x2x1
jax: 0.10.0
libtpu: 0.0.40
codegen_flags: <defaults>
</compile_context>

<pallas_src>
import functools

import jax
import jax.numpy as jnp
import numpy as np
from jax.experimental import pallas as pl
from jax.experimental.pallas import tpu as pltpu


# ----------------------------------------------------------------------------
# Fused Pallas kernel: Linear+ReLU -> 3x (ConvT1d+ReLU) -> Linear
# ----------------------------------------------------------------------------
def _decoder_fused_kernel(
    x_sref,                 # SMEM (B, nf3)                f32 input
    w1_ref, b1_ref,         # VMEM (nf3, L0, nf3), (L0, nf3)
    wc1_ref, bc1_ref,       # VMEM (K*nf3, 2nf), (1, 2nf)
    wc2_ref, bc2_ref,       # VMEM (K*2nf, nf), (1, nf)
    wc3_ref, bc3_ref,       # VMEM (K*nf, 128), (1, 128)
    w2_ref, b2_ref,         # VMEM (128, size), (1, size)
    o_ref,                  # VMEM (B*init_dim, size)
    *, B, S, L0, nf3, K,
):
    f32 = jnp.float32
    BS = B * S
    a1 = S - L0            # = 3*(K-1): slab offset of the stage-1 input

    # ---- Linear(nf3 -> nf3*L0) + ReLU, produced per batch directly as the
    # channel-last (L0, nf3) tile (PyTorch's view + permute folded into W1v).
    # nf3 scalar*matrix FMAs per batch; x scalars come from SMEM.
    pieces = []
    for b in range(B):
        acc = b1_ref[...]
        for i in range(nf3):
            acc = acc + x_sref[b, i] * w1_ref[i]
        pieces.append(jnp.zeros((a1, nf3), f32))     # leading zeros of slab b
        pieces.append(jnp.maximum(acc, 0.0))         # data ends flush at slab end
    pieces.append(jnp.zeros((K - 1, nf3), f32))      # tail padding read by the conv
    buf = jnp.concatenate(pieces, axis=0)            # (BS + K - 1, nf3)

    # ---- one ConvTranspose1d(stride=1, pad=0) + ReLU on the flat buffer.
    # Full correlation: out[r] = sum_j buf[r + j] @ W[:, :, K-1-j]  (W pre-flipped
    # and concatenated at prep time), realised as ONE (BS, K*Cin)@(K*Cin, Cout) matmul.
    def stage(buf, w_ref, b_ref, a_out, last):
        taps = jnp.concatenate([buf[j:j + BS, :] for j in range(K)], axis=1)
        y = jnp.dot(taps, w_ref[...], preferred_element_type=jnp.float32)
        y = jnp.maximum(y + b_ref[...], 0.0)          # (BS, Cout)
        if last:
            return y
        # Rebuild the slab invariant for the next stage: keep each slab's valid
        # rows [a_out, S); the first a_out rows hold relu(bias) junk and must be
        # re-zeroed (they serve as the next stage's zero padding).
        cout = y.shape[1]
        nxt = []
        for b in range(B):
            nxt.append(jnp.zeros((a_out, cout), f32))
            nxt.append(y[b * S + a_out:(b + 1) * S, :])
        nxt.append(jnp.zeros((K - 1, cout), f32))
        return jnp.concatenate(nxt, axis=0)           # (BS + K - 1, cout)

    buf = stage(buf, wc1_ref, bc1_ref, a1 - (K - 1), last=False)      # L0 -> L0+k-1
    buf = stage(buf, wc2_ref, bc2_ref, a1 - 2 * (K - 1), last=False)  # -> L0+2(k-1)
    h = stage(buf, wc3_ref, bc3_ref, 0, last=True)                    # (BS, 128)

    # ---- final Linear(128 -> size); flat rows are already (b, t) row-major.
    # (Output is only `size` lanes wide; at these shapes the masked store is
    #  negligible, padding it to 128 lanes would just add wrapper slicing.)
    o_ref[...] = jnp.dot(h, w2_ref[...], preferred_element_type=jnp.float32) + b2_ref[...]


# ----------------------------------------------------------------------------
# One-time weight re-layout (outside the hot path)
# ----------------------------------------------------------------------------
def prepare_decoder_params(params, *, init_dim, num_filters, k_size):
    nf3 = num_filters * 3
    K = k_size
    L0 = init_dim - 3 * (K - 1)

    def convt_im2col(w):   # (Cin, Cout, K) -> (K*Cin, Cout), kernel-flipped
        cin, cout, _ = w.shape
        return jnp.transpose(w[:, :, ::-1], (2, 0, 1)).reshape(K * cin, cout)

    return {
        # W1v[i, l, c] = W1[c*L0 + l, i]  (folds view(B,nf3,L0) + permute(0,2,1))
        "W1v": jnp.transpose(params["W1"].reshape(nf3, L0, nf3), (2, 1, 0)),
        "b1v": params["b1"].reshape(nf3, L0).T,
        "Wc1": convt_im2col(params["Wc1"]), "bc1": params["bc1"].reshape(1, -1),
        "Wc2": convt_im2col(params["Wc2"]), "bc2": params["bc2"].reshape(1, -1),
        "Wc3": convt_im2col(params["Wc3"]), "bc3": params["bc3"].reshape(1, -1),
        "W2t": jnp.transpose(params["W2"]), "b2t": params["b2"].reshape(1, -1),
    }


def decoder_forward_pallas(x, prep, *, init_dim, num_filters, k_size, size):
    B, nf3 = x.shape
    K = k_size
    L0 = init_dim - 3 * (K - 1)

    kernel = functools.partial(
        _decoder_fused_kernel, B=B, S=init_dim, L0=L0, nf3=nf3, K=K)

    vmem = pl.BlockSpec(memory_space=pltpu.MemorySpace.VMEM)
    smem = pl.BlockSpec(memory_space=pltpu.MemorySpace.SMEM)

    # Whole working set (weights + activations) is a few tens of KiB -> single
    # invocation, no grid. For large B, add a leading batch grid axis with
    # dimension_semantics=("parallel",) so v7x's two TensorCores split it.
    out_flat = pl.pallas_call(
        kernel,
        out_shape=jax.ShapeDtypeStruct((B * init_dim, size), jnp.float32),
        in_specs=[smem] + [vmem] * 10,
        out_specs=vmem,
    )(x, prep["W1v"], prep["b1v"], prep["Wc1"], prep["bc1"],
      prep["Wc2"], prep["bc2"], prep["Wc3"], prep["bc3"],
      prep["W2t"], prep["b2t"])

    # Contiguous split of the leading dim — a free (bitcast-level) reshape.
    return out_flat.reshape(B, init_dim, size)


# ----------------------------------------------------------------------------
# Pure-JAX reference (scatter-form ConvTranspose1d, PyTorch NCL layout)
# ----------------------------------------------------------------------------
def _convt_ref(x_ncl, w_pt, b):
    Bn, C_in, L_in = x_ncl.shape
    C_out, K = w_pt.shape[1], w_pt.shape[2]
    out = jnp.zeros((Bn, C_out, L_in + K - 1), jnp.float32)
    for i in range(L_in):
        out = out.at[:, :, i:i + K].add(
            jnp.einsum("bc,cok->bok", x_ncl[:, :, i], w_pt))
    return out + b[None, :, None]


def decoder_forward_ref(x, params, init_dim, num_filters, k_size):
    B = x.shape[0]
    nf3 = num_filters * 3
    L0 = init_dim - 3 * (k_size - 1)
    h = jnp.maximum(x @ params["W1"].T + params["b1"], 0.0)
    h = h.reshape(B, nf3, L0)
    h = jnp.maximum(_convt_ref(h, params["Wc1"], params["bc1"]), 0.0)
    h = jnp.maximum(_convt_ref(h, params["Wc2"], params["bc2"]), 0.0)
    h = jnp.maximum(_convt_ref(h, params["Wc3"], params["bc3"]), 0.0)
    h = jnp.transpose(h, (0, 2, 1))
    return h @ params["W2"].T + params["b2"]


# ----------------------------------------------------------------------------
# Main
# ----------------------------------------------------------------------------
if __name__ == "__main__":
    init_dim, num_filters, k_size, size = 16, 4, 3, 8
    B = 2
    nf3 = num_filters * 3                 # 12
    L0 = init_dim - 3 * (k_size - 1)      # 10

    key = jax.random.PRNGKey(0)
    ks = jax.random.split(key, 11)
    f32 = jnp.float32

    params = {
        # nn.Linear(nf*3, nf*3*L0): weight (out, in), bias (out,)
        "W1": 0.1 * jax.random.normal(ks[0], (nf3 * L0, nf3), f32),
        "b1": 0.1 * jax.random.normal(ks[1], (nf3 * L0,), f32),
        # nn.ConvTranspose1d weights: (in_channels, out_channels, k)
        "Wc1": 0.1 * jax.random.normal(ks[2], (nf3, num_filters * 2, k_size), f32),
        "bc1": 0.1 * jax.random.normal(ks[3], (num_filters * 2,), f32),
        "Wc2": 0.1 * jax.random.normal(ks[4], (num_filters * 2, num_filters, k_size), f32),
        "bc2": 0.1 * jax.random.normal(ks[5], (num_filters,), f32),
        "Wc3": 0.1 * jax.random.normal(ks[6], (num_filters, 128, k_size), f32),
        "bc3": 0.1 * jax.random.normal(ks[7], (128,), f32),
        # nn.Linear(128, size)
        "W2": 0.1 * jax.random.normal(ks[8], (size, 128), f32),
        "b2": 0.1 * jax.random.normal(ks[9], (size,), f32),
    }

    x = jax.random.normal(ks[10], (B, nf3), f32)

    # One-time weight re-layout (kept out of the per-forward hot path).
    prep = prepare_decoder_params(
        params, init_dim=init_dim, num_filters=num_filters, k_size=k_size)
    prep = jax.block_until_ready(prep)

    fwd = jax.jit(functools.partial(
        decoder_forward_pallas, init_dim=init_dim, num_filters=num_filters,
        k_size=k_size, size=size))

    out = jax.block_until_ready(fwd(x, prep))
    ref = jax.block_until_ready(
        decoder_forward_ref(x, params, init_dim, num_filters, k_size))

    assert out.shape == (B, init_dim, size), out.shape
    np.testing.assert_allclose(np.asarray(out), np.asarray(ref), rtol=1e-4, atol=1e-4)
    print("KERNEL_OK")
</pallas_src>

<mosaic_0001>
module attributes {stable_mosaic.version = 11 : i64} {
  func.func @_decoder_fused_kernel(%arg0: memref<2x12xf32, #tpu.memory_space<smem>>, %arg1: memref<12x10x12xf32, #tpu.memory_space<vmem>>, %arg2: memref<10x12xf32, #tpu.memory_space<vmem>>, %arg3: memref<36x8xf32, #tpu.memory_space<vmem>>, %arg4: memref<1x8xf32, #tpu.memory_space<vmem>>, %arg5: memref<24x4xf32, #tpu.memory_space<vmem>>, %arg6: memref<1x4xf32, #tpu.memory_space<vmem>>, %arg7: memref<12x128xf32, #tpu.memory_space<vmem>>, %arg8: memref<1x128xf32, #tpu.memory_space<vmem>>, %arg9: memref<128x8xf32, #tpu.memory_space<vmem>>, %arg10: memref<1x8xf32, #tpu.memory_space<vmem>>, %arg11: memref<32x8xf32, #tpu.memory_space<vmem>>) attributes {dimension_semantics = [], scalar_prefetch = 0 : i64, scratch_operands = 0 : i64, tpu.core_type = #tpu.core_type<tc>} {
    %c0 = arith.constant 0 : index
    %c0_0 = arith.constant 0 : index
    %0 = vector.load %arg2[%c0, %c0_0] : memref<10x12xf32, #tpu.memory_space<vmem>>, vector<10x12xf32>
    %c0_1 = arith.constant 0 : index
    %c0_2 = arith.constant 0 : index
    %1 = memref.load %arg0[%c0_1, %c0_2] : memref<2x12xf32, #tpu.memory_space<smem>>
    %c0_3 = arith.constant 0 : index
    %c0_4 = arith.constant 0 : index
    %c0_5 = arith.constant 0 : index
    %2 = vector.load %arg1[%c0_3, %c0_4, %c0_5] : memref<12x10x12xf32, #tpu.memory_space<vmem>>, vector<1x10x12xf32>
    %3 = vector.shape_cast %2 : vector<1x10x12xf32> to vector<10x12xf32>
    %4 = vector.broadcast %1 : f32 to vector<10x12xf32>
    %5 = arith.mulf %4, %3 : vector<10x12xf32>
    %6 = arith.addf %0, %5 : vector<10x12xf32>
    %c0_6 = arith.constant 0 : index
    %c1 = arith.constant 1 : index
    %7 = memref.load %arg0[%c0_6, %c1] : memref<2x12xf32, #tpu.memory_space<smem>>
    %c1_7 = arith.constant 1 : index
    %c0_8 = arith.constant 0 : index
    %c0_9 = arith.constant 0 : index
    %8 = vector.load %arg1[%c1_7, %c0_8, %c0_9] : memref<12x10x12xf32, #tpu.memory_space<vmem>>, vector<1x10x12xf32>
    %9 = vector.shape_cast %8 : vector<1x10x12xf32> to vector<10x12xf32>
    %10 = vector.broadcast %7 : f32 to vector<10x12xf32>
    %11 = arith.mulf %10, %9 : vector<10x12xf32>
    %12 = arith.addf %6, %11 : vector<10x12xf32>
    %c0_10 = arith.constant 0 : index
    %c2 = arith.constant 2 : index
    %13 = memref.load %arg0[%c0_10, %c2] : memref<2x12xf32, #tpu.memory_space<smem>>
    %c2_11 = arith.constant 2 : index
    %c0_12 = arith.constant 0 : index
    %c0_13 = arith.constant 0 : index
    %14 = vector.load %arg1[%c2_11, %c0_12, %c0_13] : memref<12x10x12xf32, #tpu.memory_space<vmem>>, vector<1x10x12xf32>
    %15 = vector.shape_cast %14 : vector<1x10x12xf32> to vector<10x12xf32>
    %16 = vector.broadcast %13 : f32 to vector<10x12xf32>
    %17 = arith.mulf %16, %15 : vector<10x12xf32>
    %18 = arith.addf %12, %17 : vector<10x12xf32>
    %c0_14 = arith.constant 0 : index
    %c3 = arith.constant 3 : index
    %19 = memref.load %arg0[%c0_14, %c3] : memref<2x12xf32, #tpu.memory_space<smem>>
    %c3_15 = arith.constant 3 : index
    %c0_16 = arith.constant 0 : index
    %c0_17 = arith.constant 0 : index
    %20 = vector.load %arg1[%c3_15, %c0_16, %c0_17] : memref<12x10x12xf32, #tpu.memory_space<vmem>>, vector<1x10x12xf32>
    %21 = vector.shape_cast %20 : vector<1x10x12xf32> to vector<10x12xf32>
    %22 = vector.broadcast %19 : f32 to vector<10x12xf32>
    %23 = arith.mulf %22, %21 : vector<10x12xf32>
    %24 = arith.addf %18, %23 : vector<10x12xf32>
    %c0_18 = arith.constant 0 : index
    %c4 = arith.constant 4 : index
    %25 = memref.load %arg0[%c0_18, %c4] : memref<2x12xf32, #tpu.memory_space<smem>>
    %c4_19 = arith.constant 4 : index
    %c0_20 = arith.constant 0 : index
    %c0_21 = arith.constant 0 : index
    %26 = vector.load %arg1[%c4_19, %c0_20, %c0_21] : memref<12x10x12xf32, #tpu.memory_space<vmem>>, vector<1x10x12xf32>
    %27 = vector.shape_cast %26 : vector<1x10x12xf32> to vector<10x12xf32>
    %28 = vector.broadcast %25 : f32 to vector<10x12xf32>
    %29 = arith.mulf %28, %27 : vector<10x12xf32>
    %30 = arith.addf %24, %29 : vector<10x12xf32>
    %c0_22 = arith.constant 0 : index
    %c5 = arith.constant 5 : index
    %31 = memref.load %arg0[%c0_22, %c5] : memref<2x12xf32, #tpu.memory_space<smem>>
    %c5_23 = arith.constant 5 : index
    %c0_24 = arith.constant 0 : index
    %c0_25 = arith.constant 0 : index
    %32 = vector.load %arg1[%c5_23, %c0_24, %c0_25] : memref<12x10x12xf32, #tpu.memory_space<vmem>>, vector<1x10x12xf32>
    %33 = vector.shape_cast %32 : vector<1x10x12xf32> to vector<10x12xf32>
    %34 = vector.broadcast %31 : f32 to vector<10x12xf32>
    %35 = arith.mulf %34, %33 : vector<10x12xf32>
    %36 = arith.addf %30, %35 : vector<10x12xf32>
    %c0_26 = arith.constant 0 : index
    %c6 = arith.constant 6 : index
    %37 = memref.load %arg0[%c0_26, %c6] : memref<2x12xf32, #tpu.memory_space<smem>>
    %c6_27 = arith.constant 6 : index
    %c0_28 = arith.constant 0 : index
    %c0_29 = arith.constant 0 : index
    %38 = vector.load %arg1[%c6_27, %c0_28, %c0_29] : memref<12x10x12xf32, #tpu.memory_space<vmem>>, vector<1x10x12xf32>
    %39 = vector.shape_cast %38 : vector<1x10x12xf32> to vector<10x12xf32>
    %40 = vector.broadcast %37 : f32 to vector<10x12xf32>
    %41 = arith.mulf %40, %39 : vector<10x12xf32>
    %42 = arith.addf %36, %41 : vector<10x12xf32>
    %c0_30 = arith.constant 0 : index
    %c7 = arith.constant 7 : index
    %43 = memref.load %arg0[%c0_30, %c7] : memref<2x12xf32, #tpu.memory_space<smem>>
    %c7_31 = arith.constant 7 : index
    %c0_32 = arith.constant 0 : index
    %c0_33 = arith.constant 0 : index
    %44 = vector.load %arg1[%c7_31, %c0_32, %c0_33] : memref<12x10x12xf32, #tpu.memory_space<vmem>>, vector<1x10x12xf32>
    %45 = vector.shape_cast %44 : vector<1x10x12xf32> to vector<10x12xf32>
    %46 = vector.broadcast %43 : f32 to vector<10x12xf32>
    %47 = arith.mulf %46, %45 : vector<10x12xf32>
    %48 = arith.addf %42, %47 : vector<10x12xf32>
    %c0_34 = arith.constant 0 : index
    %c8 = arith.constant 8 : index
    %49 = memref.load %arg0[%c0_34, %c8] : memref<2x12xf32, #tpu.memory_space<smem>>
    %c8_35 = arith.constant 8 : index
    %c0_36 = arith.constant 0 : index
    %c0_37 = arith.constant 0 : index
    %50 = vector.load %arg1[%c8_35, %c0_36, %c0_37] : memref<12x10x12xf32, #tpu.memory_space<vmem>>, vector<1x10x12xf32>
    %51 = vector.shape_cast %50 : vector<1x10x12xf32> to vector<10x12xf32>
    %52 = vector.broadcast %49 : f32 to vector<10x12xf32>
    %53 = arith.mulf %52, %51 : vector<10x12xf32>
    %54 = arith.addf %48, %53 : vector<10x12xf32>
    %c0_38 = arith.constant 0 : index
    %c9 = arith.constant 9 : index
    %55 = memref.load %arg0[%c0_38, %c9] : memref<2x12xf32, #tpu.memory_space<smem>>
    %c9_39 = arith.constant 9 : index
    %c0_40 = arith.constant 0 : index
    %c0_41 = arith.constant 0 : index
    %56 = vector.load %arg1[%c9_39, %c0_40, %c0_41] : memref<12x10x12xf32, #tpu.memory_space<vmem>>, vector<1x10x12xf32>
    %57 = vector.shape_cast %56 : vector<1x10x12xf32> to vector<10x12xf32>
    %58 = vector.broadcast %55 : f32 to vector<10x12xf32>
    %59 = arith.mulf %58, %57 : vector<10x12xf32>
    %60 = arith.addf %54, %59 : vector<10x12xf32>
    %c0_42 = arith.constant 0 : index
    %c10 = arith.constant 10 : index
    %61 = memref.load %arg0[%c0_42, %c10] : memref<2x12xf32, #tpu.memory_space<smem>>
    %c10_43 = arith.constant 10 : index
    %c0_44 = arith.constant 0 : index
    %c0_45 = arith.constant 0 : index
    %62 = vector.load %arg1[%c10_43, %c0_44, %c0_45] : memref<12x10x12xf32, #tpu.memory_space<vmem>>, vector<1x10x12xf32>
    %63 = vector.shape_cast %62 : vector<1x10x12xf32> to vector<10x12xf32>
    %64 = vector.broadcast %61 : f32 to vector<10x12xf32>
    %65 = arith.mulf %64, %63 : vector<10x12xf32>
    %66 = arith.addf %60, %65 : vector<10x12xf32>
    %c0_46 = arith.constant 0 : index
    %c11 = arith.constant 11 : index
    %67 = memref.load %arg0[%c0_46, %c11] : memref<2x12xf32, #tpu.memory_space<smem>>
    %c11_47 = arith.constant 11 : index
    %c0_48 = arith.constant 0 : index
    %c0_49 = arith.constant 0 : index
    %68 = vector.load %arg1[%c11_47, %c0_48, %c0_49] : memref<12x10x12xf32, #tpu.memory_space<vmem>>, vector<1x10x12xf32>
    %69 = vector.shape_cast %68 : vector<1x10x12xf32> to vector<10x12xf32>
    %70 = vector.broadcast %67 : f32 to vector<10x12xf32>
    %71 = arith.mulf %70, %69 : vector<10x12xf32>
    %72 = arith.addf %66, %71 : vector<10x12xf32>
    %cst = arith.constant 0.000000e+00 : f32
    %73 = vector.broadcast %cst : f32 to vector<6x12xf32>
    %cst_50 = arith.constant 0.000000e+00 : f32
    %74 = vector.broadcast %cst_50 : f32 to vector<10x12xf32>
    %75 = arith.maximumf %72, %74 : vector<10x12xf32>
    %c0_51 = arith.constant 0 : index
    %c0_52 = arith.constant 0 : index
    %76 = vector.load %arg2[%c0_51, %c0_52] : memref<10x12xf32, #tpu.memory_space<vmem>>, vector<10x12xf32>
    %c1_53 = arith.constant 1 : index
    %c0_54 = arith.constant 0 : index
    %77 = memref.load %arg0[%c1_53, %c0_54] : memref<2x12xf32, #tpu.memory_space<smem>>
    %c0_55 = arith.constant 0 : index
    %c0_56 = arith.constant 0 : index
    %c0_57 = arith.constant 0 : index
    %78 = vector.load %arg1[%c0_55, %c0_56, %c0_57] : memref<12x10x12xf32, #tpu.memory_space<vmem>>, vector<1x10x12xf32>
    %79 = vector.shape_cast %78 : vector<1x10x12xf32> to vector<10x12xf32>
    %80 = vector.broadcast %77 : f32 to vector<10x12xf32>
    %81 = arith.mulf %80, %79 : vector<10x12xf32>
    %82 = arith.addf %76, %81 : vector<10x12xf32>
    %c1_58 = arith.constant 1 : index
    %c1_59 = arith.constant 1 : index
    %83 = memref.load %arg0[%c1_58, %c1_59] : memref<2x12xf32, #tpu.memory_space<smem>>
    %c1_60 = arith.constant 1 : index
    %c0_61 = arith.constant 0 : index
    %c0_62 = arith.constant 0 : index
    %84 = vector.load %arg1[%c1_60, %c0_61, %c0_62] : memref<12x10x12xf32, #tpu.memory_space<vmem>>, vector<1x10x12xf32>
    %85 = vector.shape_cast %84 : vector<1x10x12xf32> to vector<10x12xf32>
    %86 = vector.broadcast %83 : f32 to vector<10x12xf32>
    %87 = arith.mulf %86, %85 : vector<10x12xf32>
    %88 = arith.addf %82, %87 : vector<10x12xf32>
    %c1_63 = arith.constant 1 : index
    %c2_64 = arith.constant 2 : index
    %89 = memref.load %arg0[%c1_63, %c2_64] : memref<2x12xf32, #tpu.memory_space<smem>>
    %c2_65 = arith.constant 2 : index
    %c0_66 = arith.constant 0 : index
    %c0_67 = arith.constant 0 : index
    %90 = vector.load %arg1[%c2_65, %c0_66, %c0_67] : memref<12x10x12xf32, #tpu.memory_space<vmem>>, vector<1x10x12xf32>
    %91 = vector.shape_cast %90 : vector<1x10x12xf32> to vector<10x12xf32>
    %92 = vector.broadcast %89 : f32 to vector<10x12xf32>
    %93 = arith.mulf %92, %91 : vector<10x12xf32>
    %94 = arith.addf %88, %93 : vector<10x12xf32>
    %c1_68 = arith.constant 1 : index
    %c3_69 = arith.constant 3 : index
    %95 = memref.load %arg0[%c1_68, %c3_69] : memref<2x12xf32, #tpu.memory_space<smem>>
    %c3_70 = arith.constant 3 : index
    %c0_71 = arith.constant 0 : index
    %c0_72 = arith.constant 0 : index
    %96 = vector.load %arg1[%c3_70, %c0_71, %c0_72] : memref<12x10x12xf32, #tpu.memory_space<vmem>>, vector<1x10x12xf32>
    %97 = vector.shape_cast %96 : vector<1x10x12xf32> to vector<10x12xf32>
    %98 = vector.broadcast %95 : f32 to vector<10x12xf32>
    %99 = arith.mulf %98, %97 : vector<10x12xf32>
    %100 = arith.addf %94, %99 : vector<10x12xf32>
    %c1_73 = arith.constant 1 : index
    %c4_74 = arith.constant 4 : index
    %101 = memref.load %arg0[%c1_73, %c4_74] : memref<2x12xf32, #tpu.memory_space<smem>>
    %c4_75 = arith.constant 4 : index
    %c0_76 = arith.constant 0 : index
    %c0_77 = arith.constant 0 : index
    %102 = vector.load %arg1[%c4_75, %c0_76, %c0_77] : memref<12x10x12xf32, #tpu.memory_space<vmem>>, vector<1x10x12xf32>
    %103 = vector.shape_cast %102 : vector<1x10x12xf32> to vector<10x12xf32>
    %104 = vector.broadcast %101 : f32 to vector<10x12xf32>
    %105 = arith.mulf %104, %103 : vector<10x12xf32>
    %106 = arith.addf %100, %105 : vector<10x12xf32>
    %c1_78 = arith.constant 1 : index
    %c5_79 = arith.constant 5 : index
    %107 = memref.load %arg0[%c1_78, %c5_79] : memref<2x12xf32, #tpu.memory_space<smem>>
    %c5_80 = arith.constant 5 : index
    %c0_81 = arith.constant 0 : index
    %c0_82 = arith.constant 0 : index
    %108 = vector.load %arg1[%c5_80, %c0_81, %c0_82] : memref<12x10x12xf32, #tpu.memory_space<vmem>>, vector<1x10x12xf32>
    %109 = vector.shape_cast %108 : vector<1x10x12xf32> to vector<10x12xf32>
    %110 = vector.broadcast %107 : f32 to vector<10x12xf32>
    %111 = arith.mulf %110, %109 : vector<10x12xf32>
    %112 = arith.addf %106, %111 : vector<10x12xf32>
    %c1_83 = arith.constant 1 : index
    %c6_84 = arith.constant 6 : index
    %113 = memref.load %arg0[%c1_83, %c6_84] : memref<2x12xf32, #tpu.memory_space<smem>>
    %c6_85 = arith.constant 6 : index
    %c0_86 = arith.constant 0 : index
    %c0_87 = arith.constant 0 : index
    %114 = vector.load %arg1[%c6_85, %c0_86, %c0_87] : memref<12x10x12xf32, #tpu.memory_space<vmem>>, vector<1x10x12xf32>
    %115 = vector.shape_cast %114 : vector<1x10x12xf32> to vector<10x12xf32>
    %116 = vector.broadcast %113 : f32 to vector<10x12xf32>
    %117 = arith.mulf %116, %115 : vector<10x12xf32>
    %118 = arith.addf %112, %117 : vector<10x12xf32>
    %c1_88 = arith.constant 1 : index
    %c7_89 = arith.constant 7 : index
    %119 = memref.load %arg0[%c1_88, %c7_89] : memref<2x12xf32, #tpu.memory_space<smem>>
    %c7_90 = arith.constant 7 : index
    %c0_91 = arith.constant 0 : index
    %c0_92 = arith.constant 0 : index
    %120 = vector.load %arg1[%c7_90, %c0_91, %c0_92] : memref<12x10x12xf32, #tpu.memory_space<vmem>>, vector<1x10x12xf32>
    %121 = vector.shape_cast %120 : vector<1x10x12xf32> to vector<10x12xf32>
    %122 = vector.broadcast %119 : f32 to vector<10x12xf32>
    %123 = arith.mulf %122, %121 : vector<10x12xf32>
    %124 = arith.addf %118, %123 : vector<10x12xf32>
    %c1_93 = arith.constant 1 : index
    %c8_94 = arith.constant 8 : index
    %125 = memref.load %arg0[%c1_93, %c8_94] : memref<2x12xf32, #tpu.memory_space<smem>>
    %c8_95 = arith.constant 8 : index
    %c0_96 = arith.constant 0 : index
    %c0_97 = arith.constant 0 : index
    %126 = vector.load %arg1[%c8_95, %c0_96, %c0_97] : memref<12x10x12xf32, #tpu.memory_space<vmem>>, vector<1x10x12xf32>
    %127 = vector.shape_cast %126 : vector<1x10x12xf32> to vector<10x12xf32>
    %128 = vector.broadcast %125 : f32 to vector<10x12xf32>
    %129 = arith.mulf %128, %127 : vector<10x12xf32>
    %130 = arith.addf %124, %129 : vector<10x12xf32>
    %c1_98 = arith.constant 1 : index
    %c9_99 = arith.constant 9 : index
    %131 = memref.load %arg0[%c1_98, %c9_99] : memref<2x12xf32, #tpu.memory_space<smem>>
    %c9_100 = arith.constant 9 : index
    %c0_101 = arith.constant 0 : index
    %c0_102 = arith.constant 0 : index
    %132 = vector.load %arg1[%c9_100, %c0_101, %c0_102] : memref<12x10x12xf32, #tpu.memory_space<vmem>>, vector<1x10x12xf32>
    %133 = vector.shape_cast %132 : vector<1x10x12xf32> to vector<10x12xf32>
    %134 = vector.broadcast %131 : f32 to vector<10x12xf32>
    %135 = arith.mulf %134, %133 : vector<10x12xf32>
    %136 = arith.addf %130, %135 : vector<10x12xf32>
    %c1_103 = arith.constant 1 : index
    %c10_104 = arith.constant 10 : index
    %137 = memref.load %arg0[%c1_103, %c10_104] : memref<2x12xf32, #tpu.memory_space<smem>>
    %c10_105 = arith.constant 10 : index
    %c0_106 = arith.constant 0 : index
    %c0_107 = arith.constant 0 : index
    %138 = vector.load %arg1[%c10_105, %c0_106, %c0_107] : memref<12x10x12xf32, #tpu.memory_space<vmem>>, vector<1x10x12xf32>
    %139 = vector.shape_cast %138 : vector<1x10x12xf32> to vector<10x12xf32>
    %140 = vector.broadcast %137 : f32 to vector<10x12xf32>
    %141 = arith.mulf %140, %139 : vector<10x12xf32>
    %142 = arith.addf %136, %141 : vector<10x12xf32>
    %c1_108 = arith.constant 1 : index
    %c11_109 = arith.constant 11 : index
    %143 = memref.load %arg0[%c1_108, %c11_109] : memref<2x12xf32, #tpu.memory_space<smem>>
    %c11_110 = arith.constant 11 : index
    %c0_111 = arith.constant 0 : index
    %c0_112 = arith.constant 0 : index
    %144 = vector.load %arg1[%c11_110, %c0_111, %c0_112] : memref<12x10x12xf32, #tpu.memory_space<vmem>>, vector<1x10x12xf32>
    %145 = vector.shape_cast %144 : vector<1x10x12xf32> to vector<10x12xf32>
    %146 = vector.broadcast %143 : f32 to vector<10x12xf32>
    %147 = arith.mulf %146, %145 : vector<10x12xf32>
    %148 = arith.addf %142, %147 : vector<10x12xf32>
    %cst_113 = arith.constant 0.000000e+00 : f32
    %149 = vector.broadcast %cst_113 : f32 to vector<6x12xf32>
    %cst_114 = arith.constant 0.000000e+00 : f32
    %150 = vector.broadcast %cst_114 : f32 to vector<10x12xf32>
    %151 = arith.maximumf %148, %150 : vector<10x12xf32>
    %cst_115 = arith.constant 0.000000e+00 : f32
    %152 = vector.broadcast %cst_115 : f32 to vector<2x12xf32>
    %153 = tpu.concatenate %73, %75, %149, %151, %152 in 0 : vector<6x12xf32>, vector<10x12xf32>, vector<6x12xf32>, vector<10x12xf32>, vector<2x12xf32> -> vector<34x12xf32>
    %154 = vector.extract_strided_slice %153 {offsets = [0, 0], sizes = [32, 12], strides = [1, 1]} : vector<34x12xf32> to vector<32x12xf32>
    %155 = vector.extract_strided_slice %153 {offsets = [1, 0], sizes = [32, 12], strides = [1, 1]} : vector<34x12xf32> to vector<32x12xf32>
    %156 = vector.extract_strided_slice %153 {offsets = [2, 0], sizes = [32, 12], strides = [1, 1]} : vector<34x12xf32> to vector<32x12xf32>
    %157 = tpu.concatenate %154, %155, %156 in 1 : vector<32x12xf32>, vector<32x12xf32>, vector<32x12xf32> -> vector<32x36xf32>
    %c0_116 = arith.constant 0 : index
    %c0_117 = arith.constant 0 : index
    %158 = vector.load %arg3[%c0_116, %c0_117] : memref<36x8xf32, #tpu.memory_space<vmem>>, vector<36x8xf32>
    %cst_118 = arith.constant dense<0.000000e+00> : vector<32x8xf32>
    %159 = tpu.matmul %157, %158, %cst_118 {dimension_numbers = #tpu.dot_dimension_numbers<[1], [0], [0], [1], [0, 0, 1, 1], [], []>} : vector<32x36xf32>, vector<36x8xf32>, vector<32x8xf32> -> vector<32x8xf32>
    %c0_119 = arith.constant 0 : index
    %c0_120 = arith.constant 0 : index
    %160 = vector.load %arg4[%c0_119, %c0_120] : memref<1x8xf32, #tpu.memory_space<vmem>>, vector<1x8xf32>
    %161 = vector.broadcast %160 : vector<1x8xf32> to vector<32x8xf32>
    %162 = arith.addf %159, %161 : vector<32x8xf32>
    %cst_121 = arith.constant 0.000000e+00 : f32
    %163 = vector.broadcast %cst_121 : f32 to vector<32x8xf32>
    %164 = arith.maximumf %162, %163 : vector<32x8xf32>
    %cst_122 = arith.constant 0.000000e+00 : f32
    %165 = vector.broadcast %cst_122 : f32 to vector<4x8xf32>
    %166 = vector.extract_strided_slice %164 {offsets = [4, 0], sizes = [12, 8], strides = [1, 1]} : vector<32x8xf32> to vector<12x8xf32>
    %cst_123 = arith.constant 0.000000e+00 : f32
    %167 = vector.broadcast %cst_123 : f32 to vector<4x8xf32>
    %168 = vector.extract_strided_slice %164 {offsets = [20, 0], sizes = [12, 8], strides = [1, 1]} : vector<32x8xf32> to vector<12x8xf32>
    %cst_124 = arith.constant 0.000000e+00 : f32
    %169 = vector.broadcast %cst_124 : f32 to vector<2x8xf32>
    %170 = tpu.concatenate %165, %166, %167, %168, %169 in 0 : vector<4x8xf32>, vector<12x8xf32>, vector<4x8xf32>, vector<12x8xf32>, vector<2x8xf32> -> vector<34x8xf32>
    %171 = vector.extract_strided_slice %170 {offsets = [0, 0], sizes = [32, 8], strides = [1, 1]} : vector<34x8xf32> to vector<32x8xf32>
    %172 = vector.extract_strided_slice %170 {offsets = [1, 0], sizes = [32, 8], strides = [1, 1]} : vector<34x8xf32> to vector<32x8xf32>
    %173 = vector.extract_strided_slice %170 {offsets = [2, 0], sizes = [32, 8], strides = [1, 1]} : vector<34x8xf32> to vector<32x8xf32>
    %174 = tpu.concatenate %171, %172, %173 in 1 : vector<32x8xf32>, vector<32x8xf32>, vector<32x8xf32> -> vector<32x24xf32>
    %c0_125 = arith.constant 0 : index
    %c0_126 = arith.constant 0 : index
    %175 = vector.load %arg5[%c0_125, %c0_126] : memref<24x4xf32, #tpu.memory_space<vmem>>, vector<24x4xf32>
    %cst_127 = arith.constant dense<0.000000e+00> : vector<32x4xf32>
    %176 = tpu.matmul %174, %175, %cst_127 {dimension_numbers = #tpu.dot_dimension_numbers<[1], [0], [0], [1], [0, 0, 1, 1], [], []>} : vector<32x24xf32>, vector<24x4xf32>, vector<32x4xf32> -> vector<32x4xf32>
    %c0_128 = arith.constant 0 : index
    %c0_129 = arith.constant 0 : index
    %177 = vector.load %arg6[%c0_128, %c0_129] : memref<1x4xf32, #tpu.memory_space<vmem>>, vector<1x4xf32>
    %178 = vector.broadcast %177 : vector<1x4xf32> to vector<32x4xf32>
    %179 = arith.addf %176, %178 : vector<32x4xf32>
    %cst_130 = arith.constant 0.000000e+00 : f32
    %180 = vector.broadcast %cst_130 : f32 to vector<32x4xf32>
    %181 = arith.maximumf %179, %180 : vector<32x4xf32>
    %cst_131 = arith.constant 0.000000e+00 : f32
    %182 = vector.broadcast %cst_131 : f32 to vector<2x4xf32>
    %183 = vector.extract_strided_slice %181 {offsets = [2, 0], sizes = [14, 4], strides = [1, 1]} : vector<32x4xf32> to vector<14x4xf32>
    %cst_132 = arith.constant 0.000000e+00 : f32
    %184 = vector.broadcast %cst_132 : f32 to vector<2x4xf32>
    %185 = vector.extract_strided_slice %181 {offsets = [18, 0], sizes = [14, 4], strides = [1, 1]} : vector<32x4xf32> to vector<14x4xf32>
    %cst_133 = arith.constant 0.000000e+00 : f32
    %186 = vector.broadcast %cst_133 : f32 to vector<2x4xf32>
    %187 = tpu.concatenate %182, %183, %184, %185, %186 in 0 : vector<2x4xf32>, vector<14x4xf32>, vector<2x4xf32>, vector<14x4xf32>, vector<2x4xf32> -> vector<34x4xf32>
    %188 = vector.extract_strided_slice %187 {offsets = [0, 0], sizes = [32, 4], strides = [1, 1]} : vector<34x4xf32> to vector<32x4xf32>
    %189 = vector.extract_strided_slice %187 {offsets = [1, 0], sizes = [32, 4], strides = [1, 1]} : vector<34x4xf32> to vector<32x4xf32>
    %190 = vector.extract_strided_slice %187 {offsets = [2, 0], sizes = [32, 4], strides = [1, 1]} : vector<34x4xf32> to vector<32x4xf32>
    %191 = tpu.concatenate %188, %189, %190 in 1 : vector<32x4xf32>, vector<32x4xf32>, vector<32x4xf32> -> vector<32x12xf32>
    %c0_134 = arith.constant 0 : index
    %c0_135 = arith.constant 0 : index
    %192 = vector.load %arg7[%c0_134, %c0_135] : memref<12x128xf32, #tpu.memory_space<vmem>>, vector<12x128xf32>
    %cst_136 = arith.constant dense<0.000000e+00> : vector<32x128xf32>
    %193 = tpu.matmul %191, %192, %cst_136 {dimension_numbers = #tpu.dot_dimension_numbers<[1], [0], [0], [1], [0, 0, 1, 1], [], []>} : vector<32x12xf32>, vector<12x128xf32>, vector<32x128xf32> -> vector<32x128xf32>
    %c0_137 = arith.constant 0 : index
    %c0_138 = arith.constant 0 : index
    %194 = vector.load %arg8[%c0_137, %c0_138] : memref<1x128xf32, #tpu.memory_space<vmem>>, vector<1x128xf32>
    %195 = vector.broadcast %194 : vector<1x128xf32> to vector<32x128xf32>
    %196 = arith.addf %193, %195 : vector<32x128xf32>
    %cst_139 = arith.constant 0.000000e+00 : f32
    %197 = vector.broadcast %cst_139 : f32 to vector<32x128xf32>
    %198 = arith.maximumf %196, %197 : vector<32x128xf32>
    %c0_140 = arith.constant 0 : index
    %c0_141 = arith.constant 0 : index
    %199 = vector.load %arg9[%c0_140, %c0_141] : memref<128x8xf32, #tpu.memory_space<vmem>>, vector<128x8xf32>
    %cst_142 = arith.constant dense<0.000000e+00> : vector<32x8xf32>
    %200 = tpu.matmul %198, %199, %cst_142 {dimension_numbers = #tpu.dot_dimension_numbers<[1], [0], [0], [1], [0, 0, 1, 1], [], []>} : vector<32x128xf32>, vector<128x8xf32>, vector<32x8xf32> -> vector<32x8xf32>
    %c0_143 = arith.constant 0 : index
    %c0_144 = arith.constant 0 : index
    %201 = vector.load %arg10[%c0_143, %c0_144] : memref<1x8xf32, #tpu.memory_space<vmem>>, vector<1x8xf32>
    %202 = vector.broadcast %201 : vector<1x8xf32> to vector<32x8xf32>
    %203 = arith.addf %200, %202 : vector<32x8xf32>
    %c0_145 = arith.constant 0 : index
    %c0_146 = arith.constant 0 : index
    %204 = vector.load %arg11[%c0_145, %c0_146] : memref<32x8xf32, #tpu.memory_space<vmem>>, vector<32x8xf32>
    tpu.vector_store %arg11[%c0_145, %c0_146], %203 {strides = array<i32>} : memref<32x8xf32, #tpu.memory_space<vmem>>, vector<32x8xf32>,
    return
  }
}

</mosaic_0001>

<llo_original>
// kernel: decoder_forward_pallas.1
$region0: #{decoder_forward_pallas.1}
  #allocation0 [shape = 'u32[]', space=smem, size = 0x4, offset = 0x4, fixed_abs, tag = 'smem constant byte address 0x4 - core index']
  #allocation1 [shape = 'u32[144,128]{1,0:T(1,128)}', space=vmem, size = 0x12000, scoped, tag = 'internal scratch']
  %s0 = inlined_call_operand.vmem [shape: f32[2,12], index: 0, kind: input, shape index: {}]
  %s1 = inlined_call_operand.vmem [shape: f32[12,10,12], index: 1, kind: input, shape index: {}]
  %s2 = inlined_call_operand.vmem [shape: f32[10,12], index: 2, kind: input, shape index: {}]
  %s3 = inlined_call_operand.vmem [shape: f32[36,8], index: 3, kind: input, shape index: {}]
  %s4 = inlined_call_operand.vmem [shape: f32[1,8], index: 4, kind: input, shape index: {}]
  %s5 = inlined_call_operand.vmem [shape: f32[24,4], index: 5, kind: input, shape index: {}]
  %s6 = inlined_call_operand.vmem [shape: f32[1,4], index: 6, kind: input, shape index: {}]
  %s7 = inlined_call_operand.vmem [shape: f32[12,128], index: 7, kind: input, shape index: {}]
  %s8 = inlined_call_operand.vmem [shape: f32[1,128], index: 8, kind: input, shape index: {}]
  %s9 = inlined_call_operand.vmem [shape: f32[128,8], index: 9, kind: input, shape index: {}]
  %s10 = inlined_call_operand.vmem [shape: f32[1,8], index: 10, kind: input, shape index: {}]
  %s11 = inlined_call_operand.vmem [shape: f32[32,8], index: 11, kind: output, shape index: {}]
  %s12 = sld [smem:[#allocation0]]
  $region58: #{decoder_forward_pallas.1} parent=0
    _
  %s14 = ssub.s32 1, %s12
  %s15 = scalar_select 0, %s14, %s12
  $region1: #{decoder_forward_pallas.1} parent=0
    #allocation2 [shape = 'u8[1024]{0}', space=smem, size = 0x400, scoped, tag = 'input window, operand 0, single buffered']
    #allocation3 [shape = 's32[1]{0}', space=sflag, size = 0x4, scoped, tag = 'scoped memory for decoder_forward_pallas.1']
    %16 = vsyncpa [#allocation3], 0
    // Predicated region
    $region2: #{decoder_forward_pallas.1} parent=1 // pred_check
      _
    $region3: #{decoder_forward_pallas.1} parent=1 // pred_check_branch
      %18 = sbr.rel (0) target = $region5
    $region4: #{decoder_forward_pallas.1} parent=1 // pred_region
      %s20 = ssub.s32 32, 32
      %21 = vsyncadd [#allocation3], %s20
      %s23 = sshll.u32 %s0, 4
      %s24 = int_to_ptr.vmem [resolvable:$true] %s23
      %26 = dma.vmem_to_smem %s24, 32, [#allocation2], [#allocation3]
    $region5: #{decoder_forward_pallas.1} parent=1 // pred_fallthru
      _
    // Predicated region
    $region6: #{decoder_forward_pallas.1} parent=1 // pred_check
      _
    $region7: #{decoder_forward_pallas.1} parent=1 // pred_check_branch
      %28 = sbr.rel (0) target = $region9
    $region8: #{decoder_forward_pallas.1} parent=1 // pred_region
      _
    $region9: #{decoder_forward_pallas.1} parent=1 // pred_fallthru
      _
    // Predicated region
    $region10: #{decoder_forward_pallas.1} parent=1 // pred_check
      _
    $region11: #{decoder_forward_pallas.1} parent=1 // pred_check_branch
      %30 = sbr.rel (0) target = $region13
    $region12: #{decoder_forward_pallas.1} parent=1 // pred_region
      _
    $region13: #{decoder_forward_pallas.1} parent=1 // pred_fallthru
      _
    // Predicated region
    $region14: #{decoder_forward_pallas.1} parent=1 // pred_check
      _
    $region15: #{decoder_forward_pallas.1} parent=1 // pred_check_branch
      %32 = sbr.rel (0) target = $region17
    $region16: #{decoder_forward_pallas.1} parent=1 // pred_region
      _
    $region17: #{decoder_forward_pallas.1} parent=1 // pred_fallthru
      _
    // Predicated region
    $region18: #{decoder_forward_pallas.1} parent=1 // pred_check
      _
    $region19: #{decoder_forward_pallas.1} parent=1 // pred_check_branch
      %34 = sbr.rel (0) target = $region21
    $region20: #{decoder_forward_pallas.1} parent=1 // pred_region
      _
    $region21: #{decoder_forward_pallas.1} parent=1 // pred_fallthru
      _
    // Predicated region
    $region22: #{decoder_forward_pallas.1} parent=1 // pred_check
      _
    $region23: #{decoder_forward_pallas.1} parent=1 // pred_check_branch
      %36 = sbr.rel (0) target = $region25
    $region24: #{decoder_forward_pallas.1} parent=1 // pred_region
      _
    $region25: #{decoder_forward_pallas.1} parent=1 // pred_fallthru
      _
    // Predicated region
    $region26: #{decoder_forward_pallas.1} parent=1 // pred_check
      _
    $region27: #{decoder_forward_pallas.1} parent=1 // pred_check_branch
      %38 = sbr.rel (0) target = $region29
    $region28: #{decoder_forward_pallas.1} parent=1 // pred_region
      _
    $region29: #{decoder_forward_pallas.1} parent=1 // pred_fallthru
      _
    // Predicated region
    $region30: #{decoder_forward_pallas.1} parent=1 // pred_check
      _
    $region31: #{decoder_forward_pallas.1} parent=1 // pred_check_branch
      %40 = sbr.rel (0) target = $region33
    $region32: #{decoder_forward_pallas.1} parent=1 // pred_region
      _
    $region33: #{decoder_forward_pallas.1} parent=1 // pred_fallthru
      _
    // Predicated region
    $region34: #{decoder_forward_pallas.1} parent=1 // pred_check
      _
    $region35: #{decoder_forward_pallas.1} parent=1 // pred_check_branch
      %42 = sbr.rel (0) target = $region37
    $region36: #{decoder_forward_pallas.1} parent=1 // pred_region
      _
    $region37: #{decoder_forward_pallas.1} parent=1 // pred_fallthru
      _
    // Predicated region
    $region38: #{decoder_forward_pallas.1} parent=1 // pred_check
      _
    $region39: #{decoder_forward_pallas.1} parent=1 // pred_check_branch
      %44 = sbr.rel (0) target = $region41
    $region40: #{decoder_forward_pallas.1} parent=1 // pred_region
      _
    $region41: #{decoder_forward_pallas.1} parent=1 // pred_fallthru
      _
    // Predicated region
    $region42: #{decoder_forward_pallas.1} parent=1 // pred_check
      _
    $region43: #{decoder_forward_pallas.1} parent=1 // pred_check_branch
      %46 = sbr.rel (0) target = $region45
    $region44: #{decoder_forward_pallas.1} parent=1 // pred_region
      _
    $region45: #{decoder_forward_pallas.1} parent=1 // pred_fallthru
      _
    // Predicated region
    $region46: #{decoder_forward_pallas.1} parent=1 // pred_check
      _
    $region47: #{decoder_forward_pallas.1} parent=1 // pred_check_branch
      %48 = sbr.rel (0) target = $region49
    $region48: #{decoder_forward_pallas.1} parent=1 // pred_region
      %49 = dma.done [#allocation3], 32
    $region49: #{decoder_forward_pallas.1} parent=1 // pred_fallthru
      _
    %50 = sfence
    %v51 = vld [vmem:[%s2] sm:$0xff]
    %v52 = vld [vmem:[%s2 + $0x8] sm:$0x3]
    %s53 = sld [smem:[#allocation2]]
    %v54 = vld [vmem:[%s1] sm:$0xff]
    %v55 = vld [vmem:[%s1 + $0x8] sm:$0x3]
    %v56 = vstv %s53
    %v57 = vmul.f32 %v56, %v54
    %v58 = vmul.f32 %v56, %v55
    %v59 = vadd.f32 %v51, %v57
    %v60 = vadd.f32 %v52, %v58
    %s61 = sld [smem:[#allocation2 + $0x1]]
    %s62 = scalar_lea.vmem %s1, 16
    %v63 = vld [vmem:[%s62] sm:$0xff]
    %v64 = vld [vmem:[%s62 + $0x8] sm:$0x3]
    %v65 = vstv %s61
    %v66 = vmul.f32 %v65, %v63
    %v67 = vmul.f32 %v65, %v64
    %v68 = vadd.f32 %v59, %v66
    %v69 = vadd.f32 %v60, %v67
    %s70 = sld [smem:[#allocation2 + $0x2]]
    %s71 = scalar_lea.vmem %s1, 32
    %v72 = vld [vmem:[%s71] sm:$0xff]
    %v73 = vld [vmem:[%s71 + $0x8] sm:$0x3]
    %v74 = vstv %s70
    %v75 = vmul.f32 %v74, %v72
    %v76 = vmul.f32 %v74, %v73
    %v77 = vadd.f32 %v68, %v75
    %v78 = vadd.f32 %v69, %v76
    %s79 = sld [smem:[#allocation2 + $0x3]]
    %s80 = scalar_lea.vmem %s1, 48
    %v81 = vld [vmem:[%s80] sm:$0xff]
    %v82 = vld [vmem:[%s80 + $0x8] sm:$0x3]
    %v83 = vstv %s79
    %v84 = vmul.f32 %v83, %v81
    %v85 = vmul.f32 %v83, %v82
    %v86 = vadd.f32 %v77, %v84
    %v87 = vadd.f32 %v78, %v85
    %s88 = sld [smem:[#allocation2 + $0x4]]
    %s89 = scalar_lea.vmem %s1, 64
    %v90 = vld [vmem:[%s89] sm:$0xff]
    %v91 = vld [vmem:[%s89 + $0x8] sm:$0x3]
    %v92 = vstv %s88
    %v93 = vmul.f32 %v92, %v90
    %v94 = vmul.f32 %v92, %v91
    %v95 = vadd.f32 %v86, %v93
    %v96 = vadd.f32 %v87, %v94
    %s97 = sld [smem:[#allocation2 + $0x5]]
    %s98 = scalar_lea.vmem %s1, 80
    %v99 = vld [vmem:[%s98] sm:$0xff]
    %v100 = vld [vmem:[%s98 + $0x8] sm:$0x3]
    %v101 = vstv %s97
    %v102 = vmul.f32 %v101, %v99
    %v103 = vmul.f32 %v101, %v100
    %v104 = vadd.f32 %v95, %v102
    %v105 = vadd.f32 %v96, %v103
    %s106 = sld [smem:[#allocation2 + $0x6]]
    %s107 = scalar_lea.vmem %s1, 96
    %v108 = vld [vmem:[%s107] sm:$0xff]
    %v109 = vld [vmem:[%s107 + $0x8] sm:$0x3]
    %v110 = vstv %s106
    %v111 = vmul.f32 %v110, %v108
    %v112 = vmul.f32 %v110, %v109
    %v113 = vadd.f32 %v104, %v111
    %v114 = vadd.f32 %v105, %v112
    %s115 = sld [smem:[#allocation2 + $0x7]]
    %s116 = scalar_lea.vmem %s1, 112
    %v117 = vld [vmem:[%s116] sm:$0xff]
    %v118 = vld [vmem:[%s116 + $0x8] sm:$0x3]
    %v119 = vstv %s115
    %v120 = vmul.f32 %v119, %v117
    %v121 = vmul.f32 %v119, %v118
    %v122 = vadd.f32 %v113, %v120
    %v123 = vadd.f32 %v114, %v121
    %s124 = sld [smem:[#allocation2 + $0x8]]
    %s125 = scalar_lea.vmem %s1, 128
    %v126 = vld [vmem:[%s125] sm:$0xff]
    %v127 = vld [vmem:[%s125 + $0x8] sm:$0x3]
    %v128 = vstv %s124
    %v129 = vmul.f32 %v128, %v126
    %v130 = vmul.f32 %v128, %v127
    %v131 = vadd.f32 %v122, %v129
    %v132 = vadd.f32 %v123, %v130
    %s133 = sld [smem:[#allocation2 + $0x9]]
    %s134 = scalar_lea.vmem %s1, 144
    %v135 = vld [vmem:[%s134] sm:$0xff]
    %v136 = vld [vmem:[%s134 + $0x8] sm:$0x3]
    %v137 = vstv %s133
    %v138 = vmul.f32 %v137, %v135
    %v139 = vmul.f32 %v137, %v136
    %v140 = vadd.f32 %v131, %v138
    %v141 = vadd.f32 %v132, %v139
    %s142 = sld [smem:[#allocation2 + $0xa]]
    %s143 = scalar_lea.vmem %s1, 160
    %v144 = vld [vmem:[%s143] sm:$0xff]
    %v145 = vld [vmem:[%s143 + $0x8] sm:$0x3]
    %v146 = vstv %s142
    %v147 = vmul.f32 %v146, %v144
    %v148 = vmul.f32 %v146, %v145
    %v149 = vadd.f32 %v140, %v147
    %v150 = vadd.f32 %v141, %v148
    %s151 = sld [smem:[#allocation2 + $0xb]]
    %s152 = scalar_lea.vmem %s1, 176
    %v153 = vld [vmem:[%s152] sm:$0xff]
    %v154 = vld [vmem:[%s152 + $0x8] sm:$0x3]
    %v155 = vstv %s151
    %v156 = vmul.f32 %v155, %v153
    %v157 = vmul.f32 %v155, %v154
    %v158 = vadd.f32 %v149, %v156
    %v159 = vadd.f32 %v150, %v157
    %v160 = vmax.f32 %v158, 0.0
    %v161 = vmax.f32 %v159, 0.0
    %s162 = sld [smem:[#allocation2 + $0x80]]
    %v163 = vstv %s162
    %v164 = vmul.f32 %v163, %v54
    %v165 = vmul.f32 %v163, %v55
    %v166 = vadd.f32 %v51, %v164
    %v167 = vadd.f32 %v52, %v165
    %s168 = sld [smem:[#allocation2 + $0x81]]
    %v169 = vstv %s168
    %v170 = vmul.f32 %v169, %v63
    %v171 = vmul.f32 %v169, %v64
    %v172 = vadd.f32 %v166, %v170
    %v173 = vadd.f32 %v167, %v171
    %s174 = sld [smem:[#allocation2 + $0x82]]
    %v175 = vstv %s174
    %v176 = vmul.f32 %v175, %v72
    %v177 = vmul.f32 %v175, %v73
    %v178 = vadd.f32 %v172, %v176
    %v179 = vadd.f32 %v173, %v177
    %s180 = sld [smem:[#allocation2 + $0x83]]
    %v181 = vstv %s180
    %v182 = vmul.f32 %v181, %v81
    %v183 = vmul.f32 %v181, %v82
    %v184 = vadd.f32 %v178, %v182
    %v185 = vadd.f32 %v179, %v183
    %s186 = sld [smem:[#allocation2 + $0x84]]
    %v187 = vstv %s186
    %v188 = vmul.f32 %v187, %v90
    %v189 = vmul.f32 %v187, %v91
    %v190 = vadd.f32 %v184, %v188
    %v191 = vadd.f32 %v185, %v189
    %s192 = sld [smem:[#allocation2 + $0x85]]
    %v193 = vstv %s192
    %v194 = vmul.f32 %v193, %v99
    %v195 = vmul.f32 %v193, %v100
    %v196 = vadd.f32 %v190, %v194
    %v197 = vadd.f32 %v191, %v195
    %s198 = sld [smem:[#allocation2 + $0x86]]
    %v199 = vstv %s198
    %v200 = vmul.f32 %v199, %v108
    %v201 = vmul.f32 %v199, %v109
    %v202 = vadd.f32 %v196, %v200
    %v203 = vadd.f32 %v197, %v201
    %s204 = sld [smem:[#allocation2 + $0x87]]
    %v205 = vstv %s204
    %v206 = vmul.f32 %v205, %v117
    %v207 = vmul.f32 %v205, %v118
    %v208 = vadd.f32 %v202, %v206
    %v209 = vadd.f32 %v203, %v207
    %s210 = sld [smem:[#allocation2 + $0x88]]
    %v211 = vstv %s210
    %v212 = vmul.f32 %v211, %v126
    %v213 = vmul.f32 %v211, %v127
    %v214 = vadd.f32 %v208, %v212
    %v215 = vadd.f32 %v209, %v213
    %s216 = sld [smem:[#allocation2 + $0x89]]
    %v217 = vstv %s216
    %v218 = vmul.f32 %v217, %v135
    %v219 = vmul.f32 %v217, %v136
    %v220 = vadd.f32 %v214, %v218
    %v221 = vadd.f32 %v215, %v219
    %s222 = sld [smem:[#allocation2 + $0x8a]]
    %v223 = vstv %s222
    %v224 = vmul.f32 %v223, %v144
    %v225 = vmul.f32 %v223, %v145
    %v226 = vadd.f32 %v220, %v224
    %v227 = vadd.f32 %v221, %v225
    %s228 = sld [smem:[#allocation2 + $0x8b]]
    %v229 = vstv %s228
    %v230 = vmul.f32 %v229, %v153
    %v231 = vmul.f32 %v229, %v154
    %v232 = vadd.f32 %v226, %v230
    %v233 = vadd.f32 %v227, %v231
    %v234 = vmax.f32 %v232, 0.0
    %v235 = vmax.f32 %v233, 0.0
    %vm238 = vcmask 1045504
    %v239 = vrot.slane %v160, 2
    %v240 = vrot.slane %v161, 2
    %v241 = vsel %vm238, %v239, %v240
    %v246 = vrot.slane %v234, 2
    %v247 = vrot.slane %v235, 2
    %v248 = vsel %vm238, %v246, %v247
    %v251 = vsel %vm238, 0.0, %v239
    %v252 = vsel %vm238, 0.0, %v246
    %vm256 = vcmask 1046528
    %v257 = vrot.slane %v251, 1
    %v258 = vrot.slane %v241, 1
    %v259 = vsel %vm256, %v257, %v258
    %v260 = vrot.slane %v252, 1
    %v261 = vsel %vm256, %v258, %v260
    %v262 = vrot.slane %v248, 1
    %v263 = vsel %vm256, %v260, %v262
    %v264 = vrot.slane 0.0, 1
    %v265 = vsel %vm256, %v262, %v264
    %266 = vrot.lane.b32.xlu0 %v259, 12
    %v267 = vpop.permute.xlu0 %266
    %268 = vrot.lane.b32.xlu0 %v261, 12
    %v269 = vpop.permute.xlu0 %268
    %270 = vrot.lane.b32.xlu0 %v263, 12
    %v271 = vpop.permute.xlu0 %270
    %272 = vrot.lane.b32.xlu0 %v265, 12
    %v273 = vpop.permute.xlu0 %272
    %v278 = vrot.slane %v251, 2
    %v279 = vrot.slane %v241, 2
    %v280 = vsel %vm238, %v278, %v279
    %v281 = vrot.slane %v252, 2
    %v282 = vsel %vm238, %v279, %v281
    %v283 = vrot.slane %v248, 2
    %v284 = vsel %vm238, %v281, %v283
    %v285 = vrot.slane 0.0, 2
    %v286 = vsel %vm238, %v283, %v285
    %287 = vrot.lane.b32.xlu0 %v280, 24
    %v288 = vpop.permute.xlu0 %287
    %289 = vrot.lane.b32.xlu0 %v282, 24
    %v290 = vpop.permute.xlu0 %289
    %291 = vrot.lane.b32.xlu0 %v284, 24
    %v292 = vpop.permute.xlu0 %291
    %293 = vrot.lane.b32.xlu0 %v286, 24
    %v294 = vpop.permute.xlu0 %293
    %vm299 = vcmask 97280
    %v300 = vsel %vm299, %v251, %v267
    %v301 = vsel %vm299, %v241, %v269
    %v302 = vsel %vm299, %v252, %v271
    %v303 = vsel %vm299, %v248, %v273
    %vm304 = vcmask 195584
    %v305 = vsel %vm304, %v300, %v288
    %v306 = vsel %vm304, %v301, %v290
    %v307 = vsel %vm304, %v302, %v292
    %v308 = vsel %vm304, %v303, %v294
    %v309 = vld [vmem:[%s3] sm:$0xff]
    %v310 = vld [vmem:[%s3 + $0x8] sm:$0xff]
    %v311 = vld [vmem:[%s3 + $0x10] sm:$0xff]
    %v312 = vld [vmem:[%s3 + $0x18] sm:$0xff]
    %v313 = vld [vmem:[%s3 + $0x20] sm:$0xf]
    %v314 = vld [vmem:[%s4] sm:$0x1]
    %v316 = vlaneseq
    %v317 = vshrl.u32 %v316, 7
    %v318 = vsub.s32 0, %v317
    %v319 = vrot.slane %v314, %v318
    %vm321 = vcmask 293888
    %v323 = vsel %vm321, %v305, 0
    %v326 = vsel %vm321, %v306, 0
    %v329 = vsel %vm321, %v307, 0
    %v332 = vsel %vm321, %v308, 0
    %vm334 = vcmask 1043456
    %v336 = vsel %vm334, %v313, 0
    %338 = vmatprep.subr.mxu0 0.0
    %339 = vmatpush1.msra.mxu0 %v309
    %340 = vmatprep.subr.mxu0 0.0
    %341 = vmatpush1.msra.mxu0 %v310
    %342 = vmatprep.subr.mxu0 0.0
    %343 = vmatpush1.msra.mxu0 %v311
    %344 = vmatprep.subr.mxu0 0.0
    %345 = vmatpush1.msra.mxu0 %v312
    %346 = vmatprep.subr.mxu0 0.0
    %347 = vmatpush1.msra.mxu0 %v336
    %348 = vmatprep.subr.mxu0 0.0
    %349 = vmatpush1.msra.mxu0 0.0
    %350 = vmatprep.subr.mxu0 0.0
    %351 = vmatpush1.msra.mxu0 0.0
    %352 = vmatprep.subr.mxu0 0.0
    %353 = vmatpush1.msra.mxu0 0.0
    %354 = vmatprep.subr.mxu0 0.0
    %355 = vmatpush1.msra.mxu0 0.0
    %356 = vmatprep.subr.mxu0 0.0
    %357 = vmatpush1.msra.mxu0 0.0
    %358 = vmatprep.subr.mxu0 0.0
    %359 = vmatpush1.msra.mxu0 0.0
    %360 = vmatprep.subr.mxu0 0.0
    %361 = vmatpush1.msra.mxu0 0.0
    %362 = vmatprep.subr.mxu0 0.0
    %363 = vmatpush1.msra.mxu0 0.0
    %364 = vmatprep.subr.mxu0 0.0
    %365 = vmatpush1.msra.mxu0 0.0
    %366 = vmatprep.subr.mxu0 0.0
    %367 = vmatpush1.msra.mxu0 0.0
    %368 = vmatprep.subr.mxu0 0.0
    %369 = vmatpush1.msra.mxu0 0.0
    %370 = vmatprep.subr.mxu0 0.0
    %371 = vmatpush1.msra.mxu0 0.0
    %372 = vmatprep.subr.mxu0 0.0
    %373 = vmatpush1.msra.mxu0 0.0
    %374 = vmatprep.subr.mxu0 0.0
    %375 = vmatpush1.msra.mxu0 0.0
    %376 = vmatprep.subr.mxu0 0.0
    %377 = vmatpush1.msra.mxu0 0.0
    %378 = vmatprep.subr.mxu0 0.0
    %379 = vmatpush1.msra.mxu0 0.0
    %380 = vmatprep.subr.mxu0 0.0
    %381 = vmatpush1.msra.mxu0 0.0
    %382 = vmatprep.subr.mxu0 0.0
    %383 = vmatpush1.msra.mxu0 0.0
    %384 = vmatprep.subr.mxu0 0.0
    %385 = vmatpush1.msra.mxu0 0.0
    %386 = vmatprep.subr.mxu0 0.0
    %387 = vmatpush1.msra.mxu0 0.0
    %388 = vmatprep.subr.mxu0 0.0
    %389 = vmatpush1.msra.mxu0 0.0
    %390 = vmatprep.subr.mxu0 0.0
    %391 = vmatpush1.msra.mxu0 0.0
    %392 = vmatprep.subr.mxu0 0.0
    %393 = vmatpush1.msra.mxu0 0.0
    %394 = vmatprep.subr.mxu0 0.0
    %395 = vmatpush1.msra.mxu0 0.0
    %396 = vmatprep.subr.mxu0 0.0
    %397 = vmatpush1.msra.mxu0 0.0
    %398 = vmatprep.subr.mxu0 0.0
    %399 = vmatpush1.msra.mxu0 0.0
    %400 = vmatprep.subr.mxu0 0.0
    %401 = vmatpush1.msra.mxu0 0.0
    %402 = vmatprep.mubr.f32.mxu0 0.0
    %403 = vmatmul.mubr.f32.gmra.mrb[0].mxu0 %v323
    %v404 = vpop.f32.mrb[0].mxu0
    %v405 = vadd.f32 %v319, %v404
    %v406 = vpop.f32.mrb[0].mxu0
    %407 = vmatprep.mubr.f32.mxu0 0.0
    %408 = vmatmul.mubr.f32.gmra.mrb[0].mxu0 %v326
    %v409 = vpop.f32.mrb[0].mxu0
    %v410 = vadd.f32 %v319, %v409
    %v411 = vpop.f32.mrb[0].mxu0
    %412 = vmatprep.mubr.f32.mxu0 0.0
    %413 = vmatmul.mubr.f32.gmra.mrb[0].mxu0 %v329
    %v414 = vpop.f32.mrb[0].mxu0
    %v415 = vadd.f32 %v319, %v414
    %v416 = vpop.f32.mrb[0].mxu0
    %417 = vmatprep.mubr.f32.mxu0 0.0
    %418 = vmatmul.mubr.f32.gmra.mrb[0].mxu0 %v332
    %v419 = vpop.f32.mrb[0].mxu0
    %v420 = vadd.f32 %v319, %v419
    %v421 = vpop.f32.mrb[0].mxu0
    %422 = vdwg.mxu0
    %v423 = vmax.f32 %v405, 0.0
    %v424 = vmax.f32 %v410, 0.0
    %v425 = vmax.f32 %v415, 0.0
    %v426 = vmax.f32 %v420, 0.0
    %v427 = vsel %vm334, 0.0, %v423
    %v428 = vsel %vm334, 0.0, %v425
    %v433 = vrot.slane %v427, 1
    %v434 = vrot.slane %v424, 1
    %v435 = vsel %vm256, %v433, %v434
    %v436 = vrot.slane %v428, 1
    %v437 = vsel %vm256, %v434, %v436
    %v438 = vrot.slane %v426, 1
    %v439 = vsel %vm256, %v436, %v438
    %v440 = vsel %vm256, %v438, %v264
    %441 = vrot.lane.b32.xlu0 %v435, 8
    %v442 = vpop.permute.xlu0 %441
    %443 = vrot.lane.b32.xlu0 %v437, 8
    %v444 = vpop.permute.xlu0 %443
    %445 = vrot.lane.b32.xlu0 %v439, 8
    %v446 = vpop.permute.xlu0 %445
    %447 = vrot.lane.b32.xlu0 %v440, 8
    %v448 = vpop.permute.xlu0 %447
    %v453 = vrot.slane %v427, 2
    %v454 = vrot.slane %v424, 2
    %v455 = vsel %vm238, %v453, %v454
    %v456 = vrot.slane %v428, 2
    %v457 = vsel %vm238, %v454, %v456
    %v458 = vrot.slane %v426, 2
    %v459 = vsel %vm238, %v456, %v458
    %v460 = vsel %vm238, %v458, %v285
    %461 = vrot.lane.b32.xlu0 %v455, 16
    %v462 = vpop.permute.xlu0 %461
    %463 = vrot.lane.b32.xlu0 %v457, 16
    %v464 = vpop.permute.xlu0 %463
    %465 = vrot.lane.b32.xlu0 %v459, 16
    %v466 = vpop.permute.xlu0 %465
    %467 = vrot.lane.b32.xlu0 %v460, 16
    %v468 = vpop.permute.xlu0 %467
    %vm473 = vcmask 64512
    %v474 = vsel %vm473, %v427, %v442
    %v475 = vsel %vm473, %v424, %v444
    %v476 = vsel %vm473, %v428, %v446
    %v477 = vsel %vm473, %v426, %v448
    %vm478 = vcmask 130048
    %v479 = vsel %vm478, %v474, %v462
    %v480 = vsel %vm478, %v475, %v464
    %v481 = vsel %vm478, %v476, %v466
    %v482 = vsel %vm478, %v477, %v468
    %v483 = vld [vmem:[%s5] sm:$0xff]
    %v484 = vld [vmem:[%s5 + $0x8] sm:$0xff]
    %v485 = vld [vmem:[%s5 + $0x10] sm:$0xff]
    %v486 = vld [vmem:[%s6] sm:$0x1]
    %v488 = vlaneseq
    %v489 = vshrl.u32 %v488, 7
    %v490 = vsub.s32 0, %v489
    %v491 = vrot.slane %v486, %v490
    %v494 = vsel %vm304, %v479, 0
    %v497 = vsel %vm304, %v480, 0
    %v500 = vsel %vm304, %v481, 0
    %v503 = vsel %vm304, %v482, 0
    %505 = vmatprep.subr.mxu0 0.0
    %506 = vmatpush1.msra.mxu0 %v483
    %507 = vmatprep.subr.mxu0 0.0
    %508 = vmatpush1.msra.mxu0 %v484
    %509 = vmatprep.subr.mxu0 0.0
    %510 = vmatpush1.msra.mxu0 %v485
    %511 = vmatprep.subr.mxu0 0.0
    %512 = vmatpush1.msra.mxu0 0.0
    %513 = vmatprep.subr.mxu0 0.0
    %514 = vmatpush1.msra.mxu0 0.0
    %515 = vmatprep.subr.mxu0 0.0
    %516 = vmatpush1.msra.mxu0 0.0
    %517 = vmatprep.subr.mxu0 0.0
    %518 = vmatpush1.msra.mxu0 0.0
    %519 = vmatprep.subr.mxu0 0.0
    %520 = vmatpush1.msra.mxu0 0.0
    %521 = vmatprep.subr.mxu0 0.0
    %522 = vmatpush1.msra.mxu0 0.0
    %523 = vmatprep.subr.mxu0 0.0
    %524 = vmatpush1.msra.mxu0 0.0
    %525 = vmatprep.subr.mxu0 0.0
    %526 = vmatpush1.msra.mxu0 0.0
    %527 = vmatprep.subr.mxu0 0.0
    %528 = vmatpush1.msra.mxu0 0.0
    %529 = vmatprep.subr.mxu0 0.0
    %530 = vmatpush1.msra.mxu0 0.0
    %531 = vmatprep.subr.mxu0 0.0
    %532 = vmatpush1.msra.mxu0 0.0
    %533 = vmatprep.subr.mxu0 0.0
    %534 = vmatpush1.msra.mxu0 0.0
    %535 = vmatprep.subr.mxu0 0.0
    %536 = vmatpush1.msra.mxu0 0.0
    %537 = vmatprep.subr.mxu0 0.0
    %538 = vmatpush1.msra.mxu0 0.0
    %539 = vmatprep.subr.mxu0 0.0
    %540 = vmatpush1.msra.mxu0 0.0
    %541 = vmatprep.subr.mxu0 0.0
    %542 = vmatpush1.msra.mxu0 0.0
    %543 = vmatprep.subr.mxu0 0.0
    %544 = vmatpush1.msra.mxu0 0.0
    %545 = vmatprep.subr.mxu0 0.0
    %546 = vmatpush1.msra.mxu0 0.0
    %547 = vmatprep.subr.mxu0 0.0
    %548 = vmatpush1.msra.mxu0 0.0
    %549 = vmatprep.subr.mxu0 0.0
    %550 = vmatpush1.msra.mxu0 0.0
    %551 = vmatprep.subr.mxu0 0.0
    %552 = vmatpush1.msra.mxu0 0.0
    %553 = vmatprep.subr.mxu0 0.0
    %554 = vmatpush1.msra.mxu0 0.0
    %555 = vmatprep.subr.mxu0 0.0
    %556 = vmatpush1.msra.mxu0 0.0
    %557 = vmatprep.subr.mxu0 0.0
    %558 = vmatpush1.msra.mxu0 0.0
    %559 = vmatprep.subr.mxu0 0.0
    %560 = vmatpush1.msra.mxu0 0.0
    %561 = vmatprep.subr.mxu0 0.0
    %562 = vmatpush1.msra.mxu0 0.0
    %563 = vmatprep.subr.mxu0 0.0
    %564 = vmatpush1.msra.mxu0 0.0
    %565 = vmatprep.subr.mxu0 0.0
    %566 = vmatpush1.msra.mxu0 0.0
    %567 = vmatprep.subr.mxu0 0.0
    %568 = vmatpush1.msra.mxu0 0.0
    %569 = vmatprep.mubr.f32.mxu0 0.0
    %570 = vmatmul.mubr.f32.gmra.mrb[0].mxu0 %v494
    %v571 = vpop.f32.mrb[0].mxu0
    %v572 = vadd.f32 %v491, %v571
    %v573 = vpop.f32.mrb[0].mxu0
    %574 = vmatprep.mubr.f32.mxu0 0.0
    %575 = vmatmul.mubr.f32.gmra.mrb[0].mxu0 %v497
    %v576 = vpop.f32.mrb[0].mxu0
    %v577 = vadd.f32 %v491, %v576
    %v578 = vpop.f32.mrb[0].mxu0
    %579 = vmatprep.mubr.f32.mxu0 0.0
    %580 = vmatmul.mubr.f32.gmra.mrb[0].mxu0 %v500
    %v581 = vpop.f32.mrb[0].mxu0
    %v582 = vadd.f32 %v491, %v581
    %v583 = vpop.f32.mrb[0].mxu0
    %584 = vmatprep.mubr.f32.mxu0 0.0
    %585 = vmatmul.mubr.f32.gmra.mrb[0].mxu0 %v503
    %v586 = vpop.f32.mrb[0].mxu0
    %v587 = vadd.f32 %v491, %v586
    %v588 = vpop.f32.mrb[0].mxu0
    %589 = vdwg.mxu0
    %v590 = vmax.f32 %v572, 0.0
    %v591 = vmax.f32 %v577, 0.0
    %v592 = vmax.f32 %v582, 0.0
    %v593 = vmax.f32 %v587, 0.0
    %vm594 = vcmask 1041408
    %v595 = vsel %vm594, 0.0, %v590
    %v596 = vsel %vm594, 0.0, %v592
    %v601 = vrot.slane %v595, 1
    %v602 = vrot.slane %v591, 1
    %v603 = vsel %vm256, %v601, %v602
    %v604 = vrot.slane %v596, 1
    %v605 = vsel %vm256, %v602, %v604
    %v606 = vrot.slane %v593, 1
    %v607 = vsel %vm256, %v604, %v606
    %v608 = vsel %vm256, %v606, %v264
    %609 = vrot.lane.b32.xlu0 %v603, 4
    %v610 = vpop.permute.xlu0 %609
    %611 = vrot.lane.b32.xlu0 %v605, 4
    %v612 = vpop.permute.xlu0 %611
    %613 = vrot.lane.b32.xlu0 %v607, 4
    %v614 = vpop.permute.xlu0 %613
    %615 = vrot.lane.b32.xlu0 %v608, 4
    %v616 = vpop.permute.xlu0 %615
    %v621 = vrot.slane %v595, 2
    %v622 = vrot.slane %v591, 2
    %v623 = vsel %vm238, %v621, %v622
    %v624 = vrot.slane %v596, 2
    %v625 = vsel %vm238, %v622, %v624
    %v626 = vrot.slane %v593, 2
    %v627 = vsel %vm238, %v624, %v626
    %v628 = vsel %vm238, %v626, %v285
    %629 = vrot.lane.b32.xlu0 %v623, 8
    %v630 = vpop.permute.xlu0 %629
    %631 = vrot.lane.b32.xlu0 %v625, 8
    %v632 = vpop.permute.xlu0 %631
    %633 = vrot.lane.b32.xlu0 %v627, 8
    %v634 = vpop.permute.xlu0 %633
    %635 = vrot.lane.b32.xlu0 %v628, 8
    %v636 = vpop.permute.xlu0 %635
    %vm641 = vcmask 31744
    %v642 = vsel %vm641, %v595, %v610
    %v643 = vsel %vm641, %v591, %v612
    %v644 = vsel %vm641, %v596, %v614
    %v645 = vsel %vm641, %v593, %v616
    %v646 = vsel %vm473, %v642, %v630
    %v647 = vsel %vm473, %v643, %v632
    %v648 = vsel %vm473, %v644, %v634
    %v649 = vsel %vm473, %v645, %v636
    %v650 = vld [vmem:[%s7] sm:$0xff]
    %v651 = vld [vmem:[%s7 + $0x8] sm:$0xf]
    %v652 = vld [vmem:[%s8] sm:$0x1]
    %v654 = vlaneseq
    %v655 = vshrl.u32 %v654, 7
    %v656 = vsub.s32 0, %v655
    %v657 = vrot.slane %v652, %v656
    %v660 = vsel %vm299, %v646, 0
    %v663 = vsel %vm299, %v647, 0
    %v666 = vsel %vm299, %v648, 0
    %v669 = vsel %vm299, %v649, 0
    %v672 = vsel %vm334, %v651, 0
    %674 = vmatprep.subr.mxu0 0.0
    %675 = vmatpush1.msra.mxu0 %v650
    %676 = vmatprep.subr.mxu0 0.0
    %677 = vmatpush1.msra.mxu0 %v672
    %678 = vmatprep.subr.mxu0 0.0
    %679 = vmatpush1.msra.mxu0 0.0
    %680 = vmatprep.subr.mxu0 0.0
    %681 = vmatpush1.msra.mxu0 0.0
    %682 = vmatprep.subr.mxu0 0.0
    %683 = vmatpush1.msra.mxu0 0.0
    %684 = vmatprep.subr.mxu0 0.0
    %685 = vmatpush1.msra.mxu0 0.0
    %686 = vmatprep.subr.mxu0 0.0
    %687 = vmatpush1.msra.mxu0 0.0
    %688 = vmatprep.subr.mxu0 0.0
    %689 = vmatpush1.msra.mxu0 0.0
    %690 = vmatprep.subr.mxu0 0.0
    %691 = vmatpush1.msra.mxu0 0.0
    %692 = vmatprep.subr.mxu0 0.0
    %693 = vmatpush1.msra.mxu0 0.0
    %694 = vmatprep.subr.mxu0 0.0
    %695 = vmatpush1.msra.mxu0 0.0
    %696 = vmatprep.subr.mxu0 0.0
    %697 = vmatpush1.msra.mxu0 0.0
    %698 = vmatprep.subr.mxu0 0.0
    %699 = vmatpush1.msra.mxu0 0.0
    %700 = vmatprep.subr.mxu0 0.0
    %701 = vmatpush1.msra.mxu0 0.0
    %702 = vmatprep.subr.mxu0 0.0
    %703 = vmatpush1.msra.mxu0 0.0
    %704 = vmatprep.subr.mxu0 0.0
    %705 = vmatpush1.msra.mxu0 0.0
    %706 = vmatprep.subr.mxu0 0.0
    %707 = vmatpush1.msra.mxu0 0.0
    %708 = vmatprep.subr.mxu0 0.0
    %709 = vmatpush1.msra.mxu0 0.0
    %710 = vmatprep.subr.mxu0 0.0
    %711 = vmatpush1.msra.mxu0 0.0
    %712 = vmatprep.subr.mxu0 0.0
    %713 = vmatpush1.msra.mxu0 0.0
    %714 = vmatprep.subr.mxu0 0.0
    %715 = vmatpush1.msra.mxu0 0.0
    %716 = vmatprep.subr.mxu0 0.0
    %717 = vmatpush1.msra.mxu0 0.0
    %718 = vmatprep.subr.mxu0 0.0
    %719 = vmatpush1.msra.mxu0 0.0
    %720 = vmatprep.subr.mxu0 0.0
    %721 = vmatpush1.msra.mxu0 0.0
    %722 = vmatprep.subr.mxu0 0.0
    %723 = vmatpush1.msra.mxu0 0.0
    %724 = vmatprep.subr.mxu0 0.0
    %725 = vmatpush1.msra.mxu0 0.0
    %726 = vmatprep.subr.mxu0 0.0
    %727 = vmatpush1.msra.mxu0 0.0
    %728 = vmatprep.subr.mxu0 0.0
    %729 = vmatpush1.msra.mxu0 0.0
    %730 = vmatprep.subr.mxu0 0.0
    %731 = vmatpush1.msra.mxu0 0.0
    %732 = vmatprep.subr.mxu0 0.0
    %733 = vmatpush1.msra.mxu0 0.0
    %734 = vmatprep.subr.mxu0 0.0
    %735 = vmatpush1.msra.mxu0 0.0
    %736 = vmatprep.subr.mxu0 0.0
    %737 = vmatpush1.msra.mxu0 0.0
    %738 = vmatprep.mubr.f32.mxu0 0.0
    %739 = vmatmul.mubr.f32.gmra.mrb[0].mxu0 %v660
    %v740 = vpop.f32.mrb[0].mxu0
    %v741 = vadd.f32 %v657, %v740
    %v742 = vpop.f32.mrb[0].mxu0
    %743 = vmatprep.mubr.f32.mxu0 0.0
    %744 = vmatmul.mubr.f32.gmra.mrb[0].mxu0 %v663
    %v745 = vpop.f32.mrb[0].mxu0
    %v746 = vadd.f32 %v657, %v745
    %v747 = vpop.f32.mrb[0].mxu0
    %748 = vmatprep.mubr.f32.mxu0 0.0
    %749 = vmatmul.mubr.f32.gmra.mrb[0].mxu0 %v666
    %v750 = vpop.f32.mrb[0].mxu0
    %v751 = vadd.f32 %v657, %v750
    %v752 = vpop.f32.mrb[0].mxu0
    %753 = vmatprep.mubr.f32.mxu0 0.0
    %754 = vmatmul.mubr.f32.gmra.mrb[0].mxu0 %v669
    %v755 = vpop.f32.mrb[0].mxu0
    %v756 = vadd.f32 %v657, %v755
    %v757 = vpop.f32.mrb[0].mxu0
    %758 = vdwg.mxu0
    %v759 = vmax.f32 %v741, 0.0
    %v760 = vmax.f32 %v746, 0.0
    %v761 = vmax.f32 %v751, 0.0
    %v762 = vmax.f32 %v756, 0.0
    %v763 = vld [vmem:[%s9] sm:$0xff]
    %v764 = vld [vmem:[%s9 + $0x8] sm:$0xff]
    %v765 = vld [vmem:[%s9 + $0x10] sm:$0xff]
    %v766 = vld [vmem:[%s9 + $0x18] sm:$0xff]
    %v767 = vld [vmem:[%s9 + $0x20] sm:$0xff]
    %v768 = vld [vmem:[%s9 + $0x28] sm:$0xff]
    %v769 = vld [vmem:[%s9 + $0x30] sm:$0xff]
    %v770 = vld [vmem:[%s9 + $0x38] sm:$0xff]
    %v771 = vld [vmem:[%s9 + $0x40] sm:$0xff]
    %v772 = vld [vmem:[%s9 + $0x48] sm:$0xff]
    %v773 = vld [vmem:[%s9 + $0x50] sm:$0xff]
    %v774 = vld [vmem:[%s9 + $0x58] sm:$0xff]
    %v775 = vld [vmem:[%s9 + $0x60] sm:$0xff]
    %v776 = vld [vmem:[%s9 + $0x68] sm:$0xff]
    %v777 = vld [vmem:[%s9 + $0x70] sm:$0xff]
    %v778 = vld [vmem:[%s9 + $0x78] sm:$0xff]
    %v779 = vld [vmem:[%s10] sm:$0x1]
    %v781 = vlaneseq
    %v782 = vshrl.u32 %v781, 7
    %v783 = vsub.s32 0, %v782
    %v784 = vrot.slane %v779, %v783
    %786 = vmatprep.subr.mxu0 0.0
    %787 = vmatpush1.msra.mxu0 %v763
    %788 = vmatprep.subr.mxu0 0.0
    %789 = vmatpush1.msra.mxu0 %v764
    %790 = vmatprep.subr.mxu0 0.0
    %791 = vmatpush1.msra.mxu0 %v765
    %792 = vmatprep.subr.mxu0 0.0
    %793 = vmatpush1.msra.mxu0 %v766
    %794 = vmatprep.subr.mxu0 0.0
    %795 = vmatpush1.msra.mxu0 %v767
    %796 = vmatprep.subr.mxu0 0.0
    %797 = vmatpush1.msra.mxu0 %v768
    %798 = vmatprep.subr.mxu0 0.0
    %799 = vmatpush1.msra.mxu0 %v769
    %800 = vmatprep.subr.mxu0 0.0
    %801 = vmatpush1.msra.mxu0 %v770
    %802 = vmatprep.subr.mxu0 0.0
    %803 = vmatpush1.msra.mxu0 %v771
    %804 = vmatprep.subr.mxu0 0.0
    %805 = vmatpush1.msra.mxu0 %v772
    %806 = vmatprep.subr.mxu0 0.0
    %807 = vmatpush1.msra.mxu0 %v773
    %808 = vmatprep.subr.mxu0 0.0
    %809 = vmatpush1.msra.mxu0 %v774
    %810 = vmatprep.subr.mxu0 0.0
    %811 = vmatpush1.msra.mxu0 %v775
    %812 = vmatprep.subr.mxu0 0.0
    %813 = vmatpush1.msra.mxu0 %v776
    %814 = vmatprep.subr.mxu0 0.0
    %815 = vmatpush1.msra.mxu0 %v777
    %816 = vmatprep.subr.mxu0 0.0
    %817 = vmatpush1.msra.mxu0 %v778
    %818 = vmatprep.subr.mxu0 0.0
    %819 = vmatpush1.msra.mxu0 0.0
    %820 = vmatprep.subr.mxu0 0.0
    %821 = vmatpush1.msra.mxu0 0.0
    %822 = vmatprep.subr.mxu0 0.0
    %823 = vmatpush1.msra.mxu0 0.0
    %824 = vmatprep.subr.mxu0 0.0
    %825 = vmatpush1.msra.mxu0 0.0
    %826 = vmatprep.subr.mxu0 0.0
    %827 = vmatpush1.msra.mxu0 0.0
    %828 = vmatprep.subr.mxu0 0.0
    %829 = vmatpush1.msra.mxu0 0.0
    %830 = vmatprep.subr.mxu0 0.0
    %831 = vmatpush1.msra.mxu0 0.0
    %832 = vmatprep.subr.mxu0 0.0
    %833 = vmatpush1.msra.mxu0 0.0
    %834 = vmatprep.subr.mxu0 0.0
    %835 = vmatpush1.msra.mxu0 0.0
    %836 = vmatprep.subr.mxu0 0.0
    %837 = vmatpush1.msra.mxu0 0.0
    %838 = vmatprep.subr.mxu0 0.0
    %839 = vmatpush1.msra.mxu0 0.0
    %840 = vmatprep.subr.mxu0 0.0
    %841 = vmatpush1.msra.mxu0 0.0
    %842 = vmatprep.subr.mxu0 0.0
    %843 = vmatpush1.msra.mxu0 0.0
    %844 = vmatprep.subr.mxu0 0.0
    %845 = vmatpush1.msra.mxu0 0.0
    %846 = vmatprep.subr.mxu0 0.0
    %847 = vmatpush1.msra.mxu0 0.0
    %848 = vmatprep.subr.mxu0 0.0
    %849 = vmatpush1.msra.mxu0 0.0
    %850 = vmatprep.mubr.f32.mxu0 0.0
    %851 = vmatmul.mubr.f32.gmra.mrb[0].mxu0 %v759
    %v852 = vpop.f32.mrb[0].mxu0
    %v853 = vadd.f32 %v784, %v852
    %v854 = vpop.f32.mrb[0].mxu0
    %855 = vmatprep.mubr.f32.mxu0 0.0
    %856 = vmatmul.mubr.f32.gmra.mrb[0].mxu0 %v760
    %v857 = vpop.f32.mrb[0].mxu0
    %v858 = vadd.f32 %v784, %v857
    %v859 = vpop.f32.mrb[0].mxu0
    %860 = vmatprep.mubr.f32.mxu0 0.0
    %861 = vmatmul.mubr.f32.gmra.mrb[0].mxu0 %v761
    %v862 = vpop.f32.mrb[0].mxu0
    %v863 = vadd.f32 %v784, %v862
    %v864 = vpop.f32.mrb[0].mxu0
    %865 = vmatprep.mubr.f32.mxu0 0.0
    %866 = vmatmul.mubr.f32.gmra.mrb[0].mxu0 %v762
    %v867 = vpop.f32.mrb[0].mxu0
    %v868 = vadd.f32 %v784, %v867
    %v869 = vpop.f32.mrb[0].mxu0
    %870 = vdwg.mxu0
    %871 = vst.msk [vmem:[%s11] sm:$0xff] %vm473, %v853
    %872 = vst.msk [vmem:[%s11 + $0x8] sm:$0xff] %vm473, %v858
    %873 = vst.msk [vmem:[%s11 + $0x10] sm:$0xff] %vm473, %v863
    %874 = vst.msk [vmem:[%s11 + $0x18] sm:$0xff] %vm473, %v868
    // Predicated region
    $region50: #{decoder_forward_pallas.1} parent=1 // pred_check
      _
    $region51: #{decoder_forward_pallas.1} parent=1 // pred_check_branch
      %876 = sbr.rel (0) target = $region53
    $region52: #{decoder_forward_pallas.1} parent=1 // pred_region
      _
    $region53: #{decoder_forward_pallas.1} parent=1 // pred_fallthru
      _
    // Predicated region
    $region54: #{decoder_forward_pallas.1} parent=1 // pred_check
      _
    $region55: #{decoder_forward_pallas.1} parent=1 // pred_check_branch
      %878 = sbr.rel (0) target = $region57
    $region56: #{decoder_forward_pallas.1} parent=1 // pred_region
      _
    $region57: #{decoder_forward_pallas.1} parent=1 // pred_fallthru
      _
    %879 = vsyncpa [#allocation3], 1

</llo_original>
